<compile_context>
chip_gen: v7x
topology: tpu7x:2x2x1
jax: 0.10.0
libtpu: 0.0.40
codegen_flags: <defaults>
</compile_context>

<pallas_src>
import functools

import jax
import jax.numpy as jnp
from jax.experimental import pallas as pl
from jax.experimental.pallas import tpu as pltpu


def _round_up(x, m):
    return ((x + m - 1) // m) * m


def _vmem_budget_bytes():
    """~75% of per-TensorCore VMEM; conservative 48 MiB fallback (v7x-safe)."""
    default = 48 * 1024 * 1024
    try:
        cap = getattr(pltpu.get_tpu_info(), "vmem_capacity_bytes", None)
        if cap:
            return int(cap * 3 // 4)
    except Exception:
        pass
    return default


def _mxu_dot(a, b, compute_dtype):
    """MXU matmul with f32 accumulation; optional narrow input dtype."""
    if compute_dtype is not None:
        a = a.astype(compute_dtype)
        b = b.astype(compute_dtype)
    return jnp.dot(a, b, preferred_element_type=jnp.float32)


def _ffn_resident_kernel(nf, compute_dtype,
                         x_ref, w1_ref, b1_ref, w2_ref, b2_ref, o_ref, acc_ref):
    """One row tile; weights fully VMEM-resident, chunked along d_ff.

    w1_ref: (nf, d_model, tf), b1_ref: (nf, 1, tf), w2_ref: (nf, tf, d_model).
    """
    # Fold b2 into the accumulator init (saves an epilogue VPU add).
    acc_ref[...] = jnp.broadcast_to(b2_ref[...], acc_ref.shape).astype(jnp.float32)

    @pl.loop(0, nf)
    def _(f):
        x = x_ref[...]                                      # (tm, d_model)
        h = _mxu_dot(x, w1_ref[f], compute_dtype)           # (tm, tf) f32
        h = jnp.maximum(h + b1_ref[f], 0.0)                 # ReLU
        # TODO(synk): training-mode dropout would mask `h` here via
        # pltpu.prng_seed / pltpu.prng_random_bits; identity at inference.
        acc_ref[...] += _mxu_dot(h, w2_ref[f], compute_dtype)

    o_ref[...] = acc_ref[...].astype(o_ref.dtype)


def _ffn_streamed_kernel(compute_dtype,
                         x_ref, w1_ref, b1_ref, w2_ref, b2_ref, o_ref, acc_ref):
    """Fallback: d_ff streamed as grid axis 1 (weights too large to reside)."""
    f = pl.program_id(1)

    @pl.when(f == 0)
    def _():
        acc_ref[...] = jnp.broadcast_to(b2_ref[...], acc_ref.shape).astype(jnp.float32)

    h = _mxu_dot(x_ref[...], w1_ref[...], compute_dtype)     # (tm, tf) f32
    h = jnp.maximum(h + b1_ref[...], 0.0)                    # ReLU
    # TODO(synk): dropout omitted (identity at inference).
    acc_ref[...] += _mxu_dot(h, w2_ref[...], compute_dtype)

    @pl.when(f == pl.num_programs(1) - 1)
    def _():
        o_ref[...] = acc_ref[...].astype(o_ref.dtype)


@functools.partial(
    jax.jit, static_argnames=("tm", "tf", "resident_weights", "compute_dtype"))
def positionwise_ffn(x, w1, b1, w2, b2, *, tm=512, tf=512,
                     resident_weights=None, compute_dtype=None):
    """x: (..., d_model) -> (..., d_model).  y = relu(x @ w1 + b1) @ w2 + b2.

    compute_dtype: optional MXU input dtype (e.g. jnp.bfloat16) when parameters
    are stored f32; accumulation stays f32.
    """
    orig_shape = x.shape
    d_model = int(orig_shape[-1])
    d_ff = int(w1.shape[1])
    n = 1
    for s in orig_shape[:-1]:
        n *= int(s)
    x2d = x.reshape(n, d_model)

    budget = _vmem_budget_bytes()
    isz = x2d.dtype.itemsize
    w1sz = w1.dtype.itemsize
    w2sz = w2.dtype.itemsize

    # ---- lane-aligned padded dims -----------------------------------------
    d_model_p = _round_up(d_model, 128)
    d_ff_p = _round_up(d_ff, 128)

    # d_ff chunk: multiple of 128 that divides d_ff_p.
    tf = max(128, min(_round_up(tf, 128), d_ff_p))
    while d_ff_p % tf:
        tf -= 128
    nf = d_ff_p // tf

    # Row tile: large & 128-aligned (full MXU M dim, unmasked stores); keep
    # >= 2 row tiles when possible so both v7x TensorCores get work.
    tm = max(128, min(_round_up(tm, 128), _round_up(n, 128)))
    if n >= 256:
        tm = min(tm, max(128, _round_up((n + 1) // 2, 128)))

    # ---- weight residency decision under the VMEM budget --------------------
    w_bytes = (d_model_p * d_ff_p * w1sz + d_ff_p * d_model_p * w2sz
               + d_ff_p * b1.dtype.itemsize + d_model_p * b2.dtype.itemsize)

    def _resident_bytes(tm_):
        # conservative: assume constant-index weight blocks still get 2 buffers
        return (2 * w_bytes + 4 * tm_ * d_model_p * isz
                + tm_ * d_model_p * 4 + tm_ * tf * 8)

    def _streamed_bytes(tm_, tf_):
        return (4 * tm_ * d_model_p * isz
                + 2 * d_model_p * tf_ * w1sz + 2 * tf_ * d_model_p * w2sz
                + tm_ * d_model_p * 4 + tm_ * tf_ * 8
                + 4 * (tf_ + d_model_p) * 4)

    if resident_weights is None:
        resident_weights = _resident_bytes(tm) <= budget

    if resident_weights:
        while _resident_bytes(tm) > budget and tm > 128:
            tm -= 128
    else:
        if _streamed_bytes(tm, tf) > budget:
            tf = 128
            nf = d_ff_p // tf
        while _streamed_bytes(tm, tf) > budget and tm > 128:
            tm -= 128

    n_p = _round_up(n, tm)
    n_row_tiles = n_p // tm

    # ---- zero padding (exact: zero x cols/rows and zero w rows/cols give 0) --
    if n_p != n or d_model_p != d_model:
        x2d = jnp.pad(x2d, ((0, n_p - n), (0, d_model_p - d_model)))
    if d_model_p != d_model or d_ff_p != d_ff:
        w1 = jnp.pad(w1, ((0, d_model_p - d_model), (0, d_ff_p - d_ff)))
        w2 = jnp.pad(w2, ((0, d_ff_p - d_ff), (0, d_model_p - d_model)))
    if d_ff_p != d_ff:
        b1 = jnp.pad(b1, ((0, d_ff_p - d_ff),))
    if d_model_p != d_model:
        b2 = jnp.pad(b2, ((0, d_model_p - d_model),))
    b1_2d = b1.reshape(1, d_ff_p)
    b2_2d = b2.reshape(1, d_model_p)

    flops = 4 * n_p * d_model_p * d_ff_p                 # two matmuls
    io_bytes = 2 * n_p * d_model_p * isz                 # x in + y out
    weight_reads = 1 if resident_weights else n_row_tiles
    cost = pl.CostEstimate(flops=flops, transcendentals=0,
                           bytes_accessed=io_bytes + weight_reads * w_bytes)

    if resident_weights:
        # Chunk weights along d_ff up front so the kernel indexes the leading
        # axis only (no dynamic lane-dim slicing inside the kernel).
        w1_c = w1.reshape(d_model_p, nf, tf).transpose(1, 0, 2)   # (nf, dm, tf)
        b1_c = b1_2d.reshape(nf, 1, tf)                           # (nf, 1, tf)
        w2_c = w2.reshape(nf, tf, d_model_p)                      # (nf, tf, dm)
        out = pl.pallas_call(
            functools.partial(_ffn_resident_kernel, nf, compute_dtype),
            out_shape=jax.ShapeDtypeStruct((n_p, d_model_p), x.dtype),
            grid=(n_row_tiles,),
            in_specs=[
                pl.BlockSpec((tm, d_model_p), lambda i: (i, 0)),          # x
                pl.BlockSpec((nf, d_model_p, tf), lambda i: (0, 0, 0)),   # w1
                pl.BlockSpec((nf, 1, tf), lambda i: (0, 0, 0)),           # b1
                pl.BlockSpec((nf, tf, d_model_p), lambda i: (0, 0, 0)),   # w2
                pl.BlockSpec((1, d_model_p), lambda i: (0, 0)),           # b2
            ],
            out_specs=pl.BlockSpec((tm, d_model_p), lambda i: (i, 0)),
            scratch_shapes=[pltpu.VMEM((tm, d_model_p), jnp.float32)],
            compiler_params=pltpu.CompilerParams(
                dimension_semantics=("parallel",),
                vmem_limit_bytes=budget),
            cost_estimate=cost,
        )(x2d, w1_c, b1_c, w2_c, b2_2d)
    else:
        out = pl.pallas_call(
            functools.partial(_ffn_streamed_kernel, compute_dtype),
            out_shape=jax.ShapeDtypeStruct((n_p, d_model_p), x.dtype),
            grid=(n_row_tiles, nf),
            in_specs=[
                pl.BlockSpec((tm, d_model_p), lambda i, f: (i, 0)),   # x
                pl.BlockSpec((d_model_p, tf), lambda i, f: (0, f)),   # w1 cols
                pl.BlockSpec((1, tf),         lambda i, f: (0, f)),   # b1
                pl.BlockSpec((tf, d_model_p), lambda i, f: (f, 0)),   # w2 rows
                pl.BlockSpec((1, d_model_p),  lambda i, f: (0, 0)),   # b2
            ],
            out_specs=pl.BlockSpec((tm, d_model_p), lambda i, f: (i, 0)),
            scratch_shapes=[pltpu.VMEM((tm, d_model_p), jnp.float32)],
            # NOTE: pipeline_mode=pl.Buffered(3) on the weight streams can hide
            # a little more DMA latency when VMEM headroom allows; omitted here
            # for portability.
            compiler_params=pltpu.CompilerParams(
                dimension_semantics=("parallel", "arbitrary"),
                vmem_limit_bytes=budget),
            cost_estimate=cost,
        )(x2d, w1, b1_2d, w2, b2_2d)

    out = out[:n, :d_model]
    return out.reshape(orig_shape)


def init_params(key, d_model, d_ff, dtype=jnp.float32):
    """Deterministic nn.Linear-style init (uniform +/- 1/sqrt(fan_in))."""
    k1, k2, k3, k4 = jax.random.split(key, 4)
    lim1 = 1.0 / (d_model ** 0.5)
    lim2 = 1.0 / (d_ff ** 0.5)
    # stored already transposed vs torch (out_features last)
    w1 = jax.random.uniform(k1, (d_model, d_ff), dtype, -lim1, lim1)
    b1 = jax.random.uniform(k2, (d_ff,), dtype, -lim1, lim1)
    w2 = jax.random.uniform(k3, (d_ff, d_model), dtype, -lim2, lim2)
    b2 = jax.random.uniform(k4, (d_model,), dtype, -lim2, lim2)
    return w1, b1, w2, b2


def _reference(x, w1, b1, w2, b2):
    return jnp.maximum(x @ w1 + b1, 0.0) @ w2 + b2


if __name__ == "__main__":
    key = jax.random.PRNGKey(0)

    # ---- test 1: tiny shapes, resident-weights path, needs lane padding -----
    batch, seq, d_model, d_ff = 2, 8, 32, 64
    kx, kp, kx2, kp2 = jax.random.split(key, 4)
    x = jax.random.normal(kx, (batch, seq, d_model), jnp.float32)
    w1, b1, w2, b2 = init_params(kp, d_model, d_ff)

    y = positionwise_ffn(x, w1, b1, w2, b2)
    y = jax.block_until_ready(y)
    ref = _reference(x, w1, b1, w2, b2)
    assert y.shape == (batch, seq, d_model)
    assert jnp.allclose(y, ref, atol=1e-5, rtol=1e-5)

    # ---- test 2: streamed path, multi-step d_ff reduction, ragged rows ------
    batch2, seq2, d_model2, d_ff2 = 2, 20, 32, 256
    x2 = jax.random.normal(kx2, (batch2, seq2, d_model2), jnp.float32)
    w1b, b1b, w2b, b2b = init_params(kp2, d_model2, d_ff2)
    y2 = positionwise_ffn(x2, w1b, b1b, w2b, b2b, tm=128, tf=128,
                          resident_weights=False)
    y2 = jax.block_until_ready(y2)
    ref2 = _reference(x2, w1b, b1b, w2b, b2b)
    assert jnp.allclose(y2, ref2, atol=1e-4, rtol=1e-5)

    # ---- test 3: bf16 MXU inputs (perf path for f32 params), f32 accum ------
    y3 = positionwise_ffn(x, w1, b1, w2, b2, compute_dtype=jnp.bfloat16)
    y3 = jax.block_until_ready(y3)
    assert jnp.allclose(y3, ref, atol=3e-2, rtol=3e-2)

    print("KERNEL_OK")
</pallas_src>

<mosaic_0001>
module attributes {stable_mosaic.version = 11 : i64} {
  func.func @_ffn_resident_kernel(%arg0: i32, %arg1: memref<128x128xf32, #tpu.memory_space<vmem>>, %arg2: memref<1x128x128xf32, #tpu.memory_space<vmem>>, %arg3: memref<1x1x128xf32, #tpu.memory_space<vmem>>, %arg4: memref<1x128x128xf32, #tpu.memory_space<vmem>>, %arg5: memref<1x128xf32, #tpu.memory_space<vmem>>, %arg6: memref<128x128xf32, #tpu.memory_space<vmem>>, %arg7: memref<128x128xf32, #tpu.memory_space<vmem>>) attributes {dimension_semantics = [#tpu.dimension_semantics<parallel>], iteration_bounds = array<i64: 1>, scalar_prefetch = 0 : i64, scratch_operands = 1 : i64, tpu.core_type = #tpu.core_type<tc>, window_params = [{transform_indices = @transform_0, window_bounds = array<i64: 128, 128>}, {pipeline_mode = #tpu.pipeline_mode<synchronous>, transform_indices = @transform_1, window_bounds = array<i64: 1, 128, 128>}, {pipeline_mode = #tpu.pipeline_mode<synchronous>, transform_indices = @transform_2, window_bounds = array<i64: 1, 1, 128>}, {pipeline_mode = #tpu.pipeline_mode<synchronous>, transform_indices = @transform_3, window_bounds = array<i64: 1, 128, 128>}, {pipeline_mode = #tpu.pipeline_mode<synchronous>, transform_indices = @transform_4, window_bounds = array<i64: 1, 128>}, {transform_indices = @transform_5, window_bounds = array<i64: 128, 128>}]} {
    %c0 = arith.constant 0 : index
    %c0_0 = arith.constant 0 : index
    %0 = vector.load %arg5[%c0, %c0_0] : memref<1x128xf32, #tpu.memory_space<vmem>>, vector<1x128xf32>
    %1 = vector.shape_cast %0 : vector<1x128xf32> to vector<1x128xf32>
    %2 = vector.broadcast %1 : vector<1x128xf32> to vector<128x128xf32>
    %c0_1 = arith.constant 0 : index
    %c0_2 = arith.constant 0 : index
    %3 = vector.load %arg7[%c0_1, %c0_2] : memref<128x128xf32, #tpu.memory_space<vmem>>, vector<128x128xf32>
    tpu.vector_store %arg7[%c0_1, %c0_2], %2 {strides = array<i32>} : memref<128x128xf32, #tpu.memory_space<vmem>>, vector<128x128xf32>,
    %c0_i32 = arith.constant 0 : i32
    %c1_i32 = arith.constant 1 : i32
    %4 = arith.muli %c0_i32, %c1_i32 : i32
    %c0_i32_3 = arith.constant 0 : i32
    %5 = arith.addi %c0_i32_3, %4 : i32
    %c0_4 = arith.constant 0 : index
    %c0_5 = arith.constant 0 : index
    %6 = vector.load %arg1[%c0_4, %c0_5] : memref<128x128xf32, #tpu.memory_space<vmem>>, vector<128x128xf32>
    %7 = arith.index_cast %5 : i32 to index
    %c0_6 = arith.constant 0 : index
    %c0_7 = arith.constant 0 : index
    %8 = vector.load %arg2[%7, %c0_6, %c0_7] : memref<1x128x128xf32, #tpu.memory_space<vmem>>, vector<1x128x128xf32>
    %9 = vector.shape_cast %8 : vector<1x128x128xf32> to vector<128x128xf32>
    %cst = arith.constant dense<0.000000e+00> : vector<128x128xf32>
    %10 = tpu.matmul %6, %9, %cst {dimension_numbers = #tpu.dot_dimension_numbers<[1], [0], [0], [1], [0, 0, 1, 1], [], []>} : vector<128x128xf32>, vector<128x128xf32>, vector<128x128xf32> -> vector<128x128xf32>
    %11 = arith.index_cast %5 : i32 to index
    %c0_8 = arith.constant 0 : index
    %c0_9 = arith.constant 0 : index
    %12 = vector.load %arg3[%11, %c0_8, %c0_9] : memref<1x1x128xf32, #tpu.memory_space<vmem>>, vector<1x1x128xf32>
    %13 = vector.shape_cast %12 : vector<1x1x128xf32> to vector<1x128xf32>
    %14 = vector.broadcast %13 : vector<1x128xf32> to vector<128x128xf32>
    %15 = arith.addf %10, %14 : vector<128x128xf32>
    %cst_10 = arith.constant 0.000000e+00 : f32
    %16 = vector.broadcast %cst_10 : f32 to vector<128x128xf32>
    %17 = arith.maximumf %15, %16 : vector<128x128xf32>
    %c0_11 = arith.constant 0 : index
    %c0_12 = arith.constant 0 : index
    %18 = vector.load %arg7[%c0_11, %c0_12] : memref<128x128xf32, #tpu.memory_space<vmem>>, vector<128x128xf32>
    %19 = arith.index_cast %5 : i32 to index
    %c0_13 = arith.constant 0 : index
    %c0_14 = arith.constant 0 : index
    %20 = vector.load %arg4[%19, %c0_13, %c0_14] : memref<1x128x128xf32, #tpu.memory_space<vmem>>, vector<1x128x128xf32>
    %21 = vector.shape_cast %20 : vector<1x128x128xf32> to vector<128x128xf32>
    %cst_15 = arith.constant dense<0.000000e+00> : vector<128x128xf32>
    %22 = tpu.matmul %17, %21, %cst_15 {dimension_numbers = #tpu.dot_dimension_numbers<[1], [0], [0], [1], [0, 0, 1, 1], [], []>} : vector<128x128xf32>, vector<128x128xf32>, vector<128x128xf32> -> vector<128x128xf32>
    %23 = arith.addf %18, %22 : vector<128x128xf32>
    %c0_16 = arith.constant 0 : index
    %c0_17 = arith.constant 0 : index
    %24 = vector.load %arg7[%c0_16, %c0_17] : memref<128x128xf32, #tpu.memory_space<vmem>>, vector<128x128xf32>
    tpu.vector_store %arg7[%c0_16, %c0_17], %23 {strides = array<i32>} : memref<128x128xf32, #tpu.memory_space<vmem>>, vector<128x128xf32>,
    %c1_i32_18 = arith.constant 1 : i32
    %c0_19 = arith.constant 0 : index
    %c0_20 = arith.constant 0 : index
    %25 = vector.load %arg7[%c0_19, %c0_20] : memref<128x128xf32, #tpu.memory_space<vmem>>, vector<128x128xf32>
    %c0_21 = arith.constant 0 : index
    %c0_22 = arith.constant 0 : index
    %26 = vector.load %arg6[%c0_21, %c0_22] : memref<128x128xf32, #tpu.memory_space<vmem>>, vector<128x128xf32>
    tpu.vector_store %arg6[%c0_21, %c0_22], %25 {strides = array<i32>} : memref<128x128xf32, #tpu.memory_space<vmem>>, vector<128x128xf32>,
    return
  }
  func.func @transform_0(%arg0: i32) -> (i32, i32) {
    %c0_i32 = arith.constant 0 : i32
    %c0_i32_0 = arith.constant 0 : i32
    return %arg0, %c0_i32 : i32, i32
  }
  func.func @transform_1(%arg0: i32) -> (i32, i32, i32) {
    %c0_i32 = arith.constant 0 : i32
    %c0_i32_0 = arith.constant 0 : i32
    %c0_i32_1 = arith.constant 0 : i32
    %c0_i32_2 = arith.constant 0 : i32
    return %c0_i32, %c0_i32_0, %c0_i32_1 : i32, i32, i32
  }
  func.func @transform_2(%arg0: i32) -> (i32, i32, i32) {
    %c0_i32 = arith.constant 0 : i32
    %c0_i32_0 = arith.constant 0 : i32
    %c0_i32_1 = arith.constant 0 : i32
    %c0_i32_2 = arith.constant 0 : i32
    return %c0_i32, %c0_i32_0, %c0_i32_1 : i32, i32, i32
  }
  func.func @transform_3(%arg0: i32) -> (i32, i32, i32) {
    %c0_i32 = arith.constant 0 : i32
    %c0_i32_0 = arith.constant 0 : i32
    %c0_i32_1 = arith.constant 0 : i32
    %c0_i32_2 = arith.constant 0 : i32
    return %c0_i32, %c0_i32_0, %c0_i32_1 : i32, i32, i32
  }
  func.func @transform_4(%arg0: i32) -> (i32, i32) {
    %c0_i32 = arith.constant 0 : i32
    %c0_i32_0 = arith.constant 0 : i32
    %c0_i32_1 = arith.constant 0 : i32
    return %c0_i32, %c0_i32_0 : i32, i32
  }
  func.func @transform_5(%arg0: i32) -> (i32, i32) {
    %c0_i32 = arith.constant 0 : i32
    %c0_i32_0 = arith.constant 0 : i32
    return %arg0, %c0_i32 : i32, i32
  }
}

</mosaic_0001>

<llo_original>
// kernel: positionwise_ffn.1
$region0: #{positionwise_ffn.1}
  #allocation0 [shape = 'u32[]', space=smem, size = 0x4, offset = 0x4, fixed_abs, tag = 'smem constant byte address 0x4 - core index']
  #allocation1 [shape = 'u32[144,128]{1,0:T(1,128)}', space=vmem, size = 0x12000, scoped, tag = 'internal scratch']
  #allocation2 [shape = 'f32[128,128]{1,0:T(8,128)}', space=vmem, size = 0x10000, scoped, tag = 'scratch operand']
  %s0 = inlined_call_operand.vmem [shape: f32[128,128], index: 0, kind: input, shape index: {}]
  %s1 = inlined_call_operand.vmem [shape: f32[1,128,128], index: 1, kind: input, shape index: {}]
  %s2 = inlined_call_operand.vmem [shape: f32[1,1,128], index: 2, kind: input, shape index: {}]
  %s3 = inlined_call_operand.vmem [shape: f32[1,128,128], index: 3, kind: input, shape index: {}]
  %s4 = inlined_call_operand.vmem [shape: f32[1,128], index: 4, kind: input, shape index: {}]
  %s5 = inlined_call_operand.vmem [shape: f32[128,128], index: 5, kind: output, shape index: {}]
  %s6 = sld [smem:[#allocation0]]
  $region30: #{positionwise_ffn.1} parent=0
    _
  %s8 = ssub.s32 1, %s6
  %s9 = scalar_select 0, %s8, %s6
  // Predicated region
  $region2: #{positionwise_ffn.1} parent=0 // pred_check
    _
  $region3: #{positionwise_ffn.1} parent=0 // pred_check_branch
    %11 = sbr.rel (0) target = $region5
  $region4: #{positionwise_ffn.1} parent=0 // pred_region
    _
  $region5: #{positionwise_ffn.1} parent=0 // pred_fallthru
    _
  // Predicated region
  $region6: #{positionwise_ffn.1} parent=0 // pred_check
    _
  $region7: #{positionwise_ffn.1} parent=0 // pred_check_branch
    %13 = sbr.rel (0) target = $region9
  $region8: #{positionwise_ffn.1} parent=0 // pred_region
    _
  $region9: #{positionwise_ffn.1} parent=0 // pred_fallthru
    _
  // Predicated region
  $region10: #{positionwise_ffn.1} parent=0 // pred_check
    _
  $region11: #{positionwise_ffn.1} parent=0 // pred_check_branch
    %15 = sbr.rel (0) target = $region13
  $region12: #{positionwise_ffn.1} parent=0 // pred_region
    _
  $region13: #{positionwise_ffn.1} parent=0 // pred_fallthru
    _
  // Predicated region
  $region14: #{positionwise_ffn.1} parent=0 // pred_check
    _
  $region15: #{positionwise_ffn.1} parent=0 // pred_check_branch
    %17 = sbr.rel (0) target = $region17
  $region16: #{positionwise_ffn.1} parent=0 // pred_region
    _
  $region17: #{positionwise_ffn.1} parent=0 // pred_fallthru
    _
  // Predicated region
  $region18: #{positionwise_ffn.1} parent=0 // pred_check
    _
  $region19: #{positionwise_ffn.1} parent=0 // pred_check_branch
    %19 = sbr.rel (0) target = $region21
  $region20: #{positionwise_ffn.1} parent=0 // pred_region
    _
  $region21: #{positionwise_ffn.1} parent=0 // pred_fallthru
    _
  %v20 = vld [vmem:[%s4] sm:$0x1]
  %v22 = vlaneseq
  %v23 = vshrl.u32 %v22, 7
  %v24 = vsub.s32 0, %v23
  %v25 = vrot.slane %v20, %v24
  %27 = vst [vmem:[#allocation2] sm:$0xff] %v25
  %28 = vst [vmem:[#allocation2 + $0x8] sm:$0xff] %v25
  %29 = vst [vmem:[#allocation2 + $0x10] sm:$0xff] %v25
  %30 = vst [vmem:[#allocation2 + $0x18] sm:$0xff] %v25
  %31 = vst [vmem:[#allocation2 + $0x20] sm:$0xff] %v25
  %32 = vst [vmem:[#allocation2 + $0x28] sm:$0xff] %v25
  %33 = vst [vmem:[#allocation2 + $0x30] sm:$0xff] %v25
  %34 = vst [vmem:[#allocation2 + $0x38] sm:$0xff] %v25
  %35 = vst [vmem:[#allocation2 + $0x40] sm:$0xff] %v25
  %36 = vst [vmem:[#allocation2 + $0x48] sm:$0xff] %v25
  %37 = vst [vmem:[#allocation2 + $0x50] sm:$0xff] %v25
  %38 = vst [vmem:[#allocation2 + $0x58] sm:$0xff] %v25
  %39 = vst [vmem:[#allocation2 + $0x60] sm:$0xff] %v25
  %40 = vst [vmem:[#allocation2 + $0x68] sm:$0xff] %v25
  %41 = vst [vmem:[#allocation2 + $0x70] sm:$0xff] %v25
  %42 = vst [vmem:[#allocation2 + $0x78] sm:$0xff] %v25
  %v43 = vld [vmem:[%s0] sm:$0xff]
  %v44 = vld [vmem:[%s0 + $0x8] sm:$0xff]
  %v45 = vld [vmem:[%s0 + $0x10] sm:$0xff]
  %v46 = vld [vmem:[%s0 + $0x18] sm:$0xff]
  %v47 = vld [vmem:[%s0 + $0x20] sm:$0xff]
  %v48 = vld [vmem:[%s0 + $0x28] sm:$0xff]
  %v49 = vld [vmem:[%s0 + $0x30] sm:$0xff]
  %v50 = vld [vmem:[%s0 + $0x38] sm:$0xff]
  %v51 = vld [vmem:[%s0 + $0x40] sm:$0xff]
  %v52 = vld [vmem:[%s0 + $0x48] sm:$0xff]
  %v53 = vld [vmem:[%s0 + $0x50] sm:$0xff]
  %v54 = vld [vmem:[%s0 + $0x58] sm:$0xff]
  %v55 = vld [vmem:[%s0 + $0x60] sm:$0xff]
  %v56 = vld [vmem:[%s0 + $0x68] sm:$0xff]
  %v57 = vld [vmem:[%s0 + $0x70] sm:$0xff]
  %v58 = vld [vmem:[%s0 + $0x78] sm:$0xff]
  %v59 = vld [vmem:[%s1] sm:$0xff]
  %v60 = vld [vmem:[%s1 + $0x8] sm:$0xff]
  %v61 = vld [vmem:[%s1 + $0x10] sm:$0xff]
  %v62 = vld [vmem:[%s1 + $0x18] sm:$0xff]
  %v63 = vld [vmem:[%s1 + $0x20] sm:$0xff]
  %v64 = vld [vmem:[%s1 + $0x28] sm:$0xff]
  %v65 = vld [vmem:[%s1 + $0x30] sm:$0xff]
  %v66 = vld [vmem:[%s1 + $0x38] sm:$0xff]
  %v67 = vld [vmem:[%s1 + $0x40] sm:$0xff]
  %v68 = vld [vmem:[%s1 + $0x48] sm:$0xff]
  %v69 = vld [vmem:[%s1 + $0x50] sm:$0xff]
  %v70 = vld [vmem:[%s1 + $0x58] sm:$0xff]
  %v71 = vld [vmem:[%s1 + $0x60] sm:$0xff]
  %v72 = vld [vmem:[%s1 + $0x68] sm:$0xff]
  %v73 = vld [vmem:[%s1 + $0x70] sm:$0xff]
  %v74 = vld [vmem:[%s1 + $0x78] sm:$0xff]
  %v75 = vld [vmem:[%s2] sm:$0x1]
  %v77 = vlaneseq
  %v78 = vshrl.u32 %v77, 7
  %v79 = vsub.s32 0, %v78
  %v80 = vrot.slane %v75, %v79
  %82 = vmatprep.subr.mxu0 0.0
  %83 = vmatpush1.msra.mxu0 %v59
  %84 = vmatprep.subr.mxu0 0.0
  %85 = vmatpush1.msra.mxu0 %v60
  %86 = vmatprep.subr.mxu0 0.0
  %87 = vmatpush1.msra.mxu0 %v61
  %88 = vmatprep.subr.mxu0 0.0
  %89 = vmatpush1.msra.mxu0 %v62
  %90 = vmatprep.subr.mxu0 0.0
  %91 = vmatpush1.msra.mxu0 %v63
  %92 = vmatprep.subr.mxu0 0.0
  %93 = vmatpush1.msra.mxu0 %v64
  %94 = vmatprep.subr.mxu0 0.0
  %95 = vmatpush1.msra.mxu0 %v65
  %96 = vmatprep.subr.mxu0 0.0
  %97 = vmatpush1.msra.mxu0 %v66
  %98 = vmatprep.subr.mxu0 0.0
  %99 = vmatpush1.msra.mxu0 %v67
  %100 = vmatprep.subr.mxu0 0.0
  %101 = vmatpush1.msra.mxu0 %v68
  %102 = vmatprep.subr.mxu0 0.0
  %103 = vmatpush1.msra.mxu0 %v69
  %104 = vmatprep.subr.mxu0 0.0
  %105 = vmatpush1.msra.mxu0 %v70
  %106 = vmatprep.subr.mxu0 0.0
  %107 = vmatpush1.msra.mxu0 %v71
  %108 = vmatprep.subr.mxu0 0.0
  %109 = vmatpush1.msra.mxu0 %v72
  %110 = vmatprep.subr.mxu0 0.0
  %111 = vmatpush1.msra.mxu0 %v73
  %112 = vmatprep.subr.mxu0 0.0
  %113 = vmatpush1.msra.mxu0 %v74
  %114 = vmatprep.subr.mxu0 0.0
  %115 = vmatpush1.msra.mxu0 0.0
  %116 = vmatprep.subr.mxu0 0.0
  %117 = vmatpush1.msra.mxu0 0.0
  %118 = vmatprep.subr.mxu0 0.0
  %119 = vmatpush1.msra.mxu0 0.0
  %120 = vmatprep.subr.mxu0 0.0
  %121 = vmatpush1.msra.mxu0 0.0
  %122 = vmatprep.subr.mxu0 0.0
  %123 = vmatpush1.msra.mxu0 0.0
  %124 = vmatprep.subr.mxu0 0.0
  %125 = vmatpush1.msra.mxu0 0.0
  %126 = vmatprep.subr.mxu0 0.0
  %127 = vmatpush1.msra.mxu0 0.0
  %128 = vmatprep.subr.mxu0 0.0
  %129 = vmatpush1.msra.mxu0 0.0
  %130 = vmatprep.subr.mxu0 0.0
  %131 = vmatpush1.msra.mxu0 0.0
  %132 = vmatprep.subr.mxu0 0.0
  %133 = vmatpush1.msra.mxu0 0.0
  %134 = vmatprep.subr.mxu0 0.0
  %135 = vmatpush1.msra.mxu0 0.0
  %136 = vmatprep.subr.mxu0 0.0
  %137 = vmatpush1.msra.mxu0 0.0
  %138 = vmatprep.subr.mxu0 0.0
  %139 = vmatpush1.msra.mxu0 0.0
  %140 = vmatprep.subr.mxu0 0.0
  %141 = vmatpush1.msra.mxu0 0.0
  %142 = vmatprep.subr.mxu0 0.0
  %143 = vmatpush1.msra.mxu0 0.0
  %144 = vmatprep.subr.mxu0 0.0
  %145 = vmatpush1.msra.mxu0 0.0
  %146 = vmatprep.mubr.f32.mxu0 0.0
  %147 = vmatmul.mubr.f32.gmra.mrb[0].mxu0 %v43
  %v148 = vpop.f32.mrb[0].mxu0
  %v149 = vadd.f32 %v80, %v148
  %v150 = vpop.f32.mrb[0].mxu0
  %151 = vmatprep.mubr.f32.mxu0 0.0
  %152 = vmatmul.mubr.f32.gmra.mrb[0].mxu0 %v44
  %v153 = vpop.f32.mrb[0].mxu0
  %v154 = vadd.f32 %v80, %v153
  %v155 = vpop.f32.mrb[0].mxu0
  %156 = vmatprep.mubr.f32.mxu0 0.0
  %157 = vmatmul.mubr.f32.gmra.mrb[0].mxu0 %v45
  %v158 = vpop.f32.mrb[0].mxu0
  %v159 = vadd.f32 %v80, %v158
  %v160 = vpop.f32.mrb[0].mxu0
  %161 = vmatprep.mubr.f32.mxu0 0.0
  %162 = vmatmul.mubr.f32.gmra.mrb[0].mxu0 %v46
  %v163 = vpop.f32.mrb[0].mxu0
  %v164 = vadd.f32 %v80, %v163
  %v165 = vpop.f32.mrb[0].mxu0
  %166 = vmatprep.mubr.f32.mxu0 0.0
  %167 = vmatmul.mubr.f32.gmra.mrb[0].mxu0 %v47
  %v168 = vpop.f32.mrb[0].mxu0
  %v169 = vadd.f32 %v80, %v168
  %v170 = vpop.f32.mrb[0].mxu0
  %171 = vmatprep.mubr.f32.mxu0 0.0
  %172 = vmatmul.mubr.f32.gmra.mrb[0].mxu0 %v48
  %v173 = vpop.f32.mrb[0].mxu0
  %v174 = vadd.f32 %v80, %v173
  %v175 = vpop.f32.mrb[0].mxu0
  %176 = vmatprep.mubr.f32.mxu0 0.0
  %177 = vmatmul.mubr.f32.gmra.mrb[0].mxu0 %v49
  %v178 = vpop.f32.mrb[0].mxu0
  %v179 = vadd.f32 %v80, %v178
  %v180 = vpop.f32.mrb[0].mxu0
  %181 = vmatprep.mubr.f32.mxu0 0.0
  %182 = vmatmul.mubr.f32.gmra.mrb[0].mxu0 %v50
  %v183 = vpop.f32.mrb[0].mxu0
  %v184 = vadd.f32 %v80, %v183
  %v185 = vpop.f32.mrb[0].mxu0
  %186 = vmatprep.mubr.f32.mxu0 0.0
  %187 = vmatmul.mubr.f32.gmra.mrb[0].mxu0 %v51
  %v188 = vpop.f32.mrb[0].mxu0
  %v189 = vadd.f32 %v80, %v188
  %v190 = vpop.f32.mrb[0].mxu0
  %191 = vmatprep.mubr.f32.mxu0 0.0
  %192 = vmatmul.mubr.f32.gmra.mrb[0].mxu0 %v52
  %v193 = vpop.f32.mrb[0].mxu0
  %v194 = vadd.f32 %v80, %v193
  %v195 = vpop.f32.mrb[0].mxu0
  %196 = vmatprep.mubr.f32.mxu0 0.0
  %197 = vmatmul.mubr.f32.gmra.mrb[0].mxu0 %v53
  %v198 = vpop.f32.mrb[0].mxu0
  %v199 = vadd.f32 %v80, %v198
  %v200 = vpop.f32.mrb[0].mxu0
  %201 = vmatprep.mubr.f32.mxu0 0.0
  %202 = vmatmul.mubr.f32.gmra.mrb[0].mxu0 %v54
  %v203 = vpop.f32.mrb[0].mxu0
  %v204 = vadd.f32 %v80, %v203
  %v205 = vpop.f32.mrb[0].mxu0
  %206 = vmatprep.mubr.f32.mxu0 0.0
  %207 = vmatmul.mubr.f32.gmra.mrb[0].mxu0 %v55
  %v208 = vpop.f32.mrb[0].mxu0
  %v209 = vadd.f32 %v80, %v208
  %v210 = vpop.f32.mrb[0].mxu0
  %211 = vmatprep.mubr.f32.mxu0 0.0
  %212 = vmatmul.mubr.f32.gmra.mrb[0].mxu0 %v56
  %v213 = vpop.f32.mrb[0].mxu0
  %v214 = vadd.f32 %v80, %v213
  %v215 = vpop.f32.mrb[0].mxu0
  %216 = vmatprep.mubr.f32.mxu0 0.0
  %217 = vmatmul.mubr.f32.gmra.mrb[0].mxu0 %v57
  %v218 = vpop.f32.mrb[0].mxu0
  %v219 = vadd.f32 %v80, %v218
  %v220 = vpop.f32.mrb[0].mxu0
  %221 = vmatprep.mubr.f32.mxu0 0.0
  %222 = vmatmul.mubr.f32.gmra.mrb[0].mxu0 %v58
  %v223 = vpop.f32.mrb[0].mxu0
  %v224 = vadd.f32 %v80, %v223
  %v225 = vpop.f32.mrb[0].mxu0
  %226 = vdwg.mxu0
  %v227 = vmax.f32 %v149, 0.0
  %v228 = vmax.f32 %v154, 0.0
  %v229 = vmax.f32 %v159, 0.0
  %v230 = vmax.f32 %v164, 0.0
  %v231 = vmax.f32 %v169, 0.0
  %v232 = vmax.f32 %v174, 0.0
  %v233 = vmax.f32 %v179, 0.0
  %v234 = vmax.f32 %v184, 0.0
  %v235 = vmax.f32 %v189, 0.0
  %v236 = vmax.f32 %v194, 0.0
  %v237 = vmax.f32 %v199, 0.0
  %v238 = vmax.f32 %v204, 0.0
  %v239 = vmax.f32 %v209, 0.0
  %v240 = vmax.f32 %v214, 0.0
  %v241 = vmax.f32 %v219, 0.0
  %v242 = vmax.f32 %v224, 0.0
  %v243 = vld [vmem:[#allocation2] sm:$0xff]
  %v244 = vld [vmem:[#allocation2 + $0x8] sm:$0xff]
  %v245 = vld [vmem:[#allocation2 + $0x10] sm:$0xff]
  %v246 = vld [vmem:[#allocation2 + $0x18] sm:$0xff]
  %v247 = vld [vmem:[#allocation2 + $0x20] sm:$0xff]
  %v248 = vld [vmem:[#allocation2 + $0x28] sm:$0xff]
  %v249 = vld [vmem:[#allocation2 + $0x30] sm:$0xff]
  %v250 = vld [vmem:[#allocation2 + $0x38] sm:$0xff]
  %v251 = vld [vmem:[#allocation2 + $0x40] sm:$0xff]
  %v252 = vld [vmem:[#allocation2 + $0x48] sm:$0xff]
  %v253 = vld [vmem:[#allocation2 + $0x50] sm:$0xff]
  %v254 = vld [vmem:[#allocation2 + $0x58] sm:$0xff]
  %v255 = vld [vmem:[#allocation2 + $0x60] sm:$0xff]
  %v256 = vld [vmem:[#allocation2 + $0x68] sm:$0xff]
  %v257 = vld [vmem:[#allocation2 + $0x70] sm:$0xff]
  %v258 = vld [vmem:[#allocation2 + $0x78] sm:$0xff]
  %v259 = vld [vmem:[%s3] sm:$0xff]
  %v260 = vld [vmem:[%s3 + $0x8] sm:$0xff]
  %v261 = vld [vmem:[%s3 + $0x10] sm:$0xff]
  %v262 = vld [vmem:[%s3 + $0x18] sm:$0xff]
  %v263 = vld [vmem:[%s3 + $0x20] sm:$0xff]
  %v264 = vld [vmem:[%s3 + $0x28] sm:$0xff]
  %v265 = vld [vmem:[%s3 + $0x30] sm:$0xff]
  %v266 = vld [vmem:[%s3 + $0x38] sm:$0xff]
  %v267 = vld [vmem:[%s3 + $0x40] sm:$0xff]
  %v268 = vld [vmem:[%s3 + $0x48] sm:$0xff]
  %v269 = vld [vmem:[%s3 + $0x50] sm:$0xff]
  %v270 = vld [vmem:[%s3 + $0x58] sm:$0xff]
  %v271 = vld [vmem:[%s3 + $0x60] sm:$0xff]
  %v272 = vld [vmem:[%s3 + $0x68] sm:$0xff]
  %v273 = vld [vmem:[%s3 + $0x70] sm:$0xff]
  %v274 = vld [vmem:[%s3 + $0x78] sm:$0xff]
  %275 = vmatprep.subr.mxu0 0.0
  %276 = vmatpush1.msra.mxu0 %v259
  %277 = vmatprep.subr.mxu0 0.0
  %278 = vmatpush1.msra.mxu0 %v260
  %279 = vmatprep.subr.mxu0 0.0
  %280 = vmatpush1.msra.mxu0 %v261
  %281 = vmatprep.subr.mxu0 0.0
  %282 = vmatpush1.msra.mxu0 %v262
  %283 = vmatprep.subr.mxu0 0.0
  %284 = vmatpush1.msra.mxu0 %v263
  %285 = vmatprep.subr.mxu0 0.0
  %286 = vmatpush1.msra.mxu0 %v264
  %287 = vmatprep.subr.mxu0 0.0
  %288 = vmatpush1.msra.mxu0 %v265
  %289 = vmatprep.subr.mxu0 0.0
  %290 = vmatpush1.msra.mxu0 %v266
  %291 = vmatprep.subr.mxu0 0.0
  %292 = vmatpush1.msra.mxu0 %v267
  %293 = vmatprep.subr.mxu0 0.0
  %294 = vmatpush1.msra.mxu0 %v268
  %295 = vmatprep.subr.mxu0 0.0
  %296 = vmatpush1.msra.mxu0 %v269
  %297 = vmatprep.subr.mxu0 0.0
  %298 = vmatpush1.msra.mxu0 %v270
  %299 = vmatprep.subr.mxu0 0.0
  %300 = vmatpush1.msra.mxu0 %v271
  %301 = vmatprep.subr.mxu0 0.0
  %302 = vmatpush1.msra.mxu0 %v272
  %303 = vmatprep.subr.mxu0 0.0
  %304 = vmatpush1.msra.mxu0 %v273
  %305 = vmatprep.subr.mxu0 0.0
  %306 = vmatpush1.msra.mxu0 %v274
  %307 = vmatprep.subr.mxu0 0.0
  %308 = vmatpush1.msra.mxu0 0.0
  %309 = vmatprep.subr.mxu0 0.0
  %310 = vmatpush1.msra.mxu0 0.0
  %311 = vmatprep.subr.mxu0 0.0
  %312 = vmatpush1.msra.mxu0 0.0
  %313 = vmatprep.subr.mxu0 0.0
  %314 = vmatpush1.msra.mxu0 0.0
  %315 = vmatprep.subr.mxu0 0.0
  %316 = vmatpush1.msra.mxu0 0.0
  %317 = vmatprep.subr.mxu0 0.0
  %318 = vmatpush1.msra.mxu0 0.0
  %319 = vmatprep.subr.mxu0 0.0
  %320 = vmatpush1.msra.mxu0 0.0
  %321 = vmatprep.subr.mxu0 0.0
  %322 = vmatpush1.msra.mxu0 0.0
  %323 = vmatprep.subr.mxu0 0.0
  %324 = vmatpush1.msra.mxu0 0.0
  %325 = vmatprep.subr.mxu0 0.0
  %326 = vmatpush1.msra.mxu0 0.0
  %327 = vmatprep.subr.mxu0 0.0
  %328 = vmatpush1.msra.mxu0 0.0
  %329 = vmatprep.subr.mxu0 0.0
  %330 = vmatpush1.msra.mxu0 0.0
  %331 = vmatprep.subr.mxu0 0.0
  %332 = vmatpush1.msra.mxu0 0.0
  %333 = vmatprep.subr.mxu0 0.0
  %334 = vmatpush1.msra.mxu0 0.0
  %335 = vmatprep.subr.mxu0 0.0
  %336 = vmatpush1.msra.mxu0 0.0
  %337 = vmatprep.subr.mxu0 0.0
  %338 = vmatpush1.msra.mxu0 0.0
  %339 = vmatprep.mubr.f32.mxu0 0.0
  %340 = vmatmul.mubr.f32.gmra.mrb[0].mxu0 %v227
  %v341 = vpop.f32.mrb[0].mxu0
  %v342 = vadd.f32 0.0, %v341
  %v343 = vpop.f32.mrb[0].mxu0
  %344 = vmatprep.mubr.f32.mxu0 0.0
  %345 = vmatmul.mubr.f32.gmra.mrb[0].mxu0 %v228
  %v346 = vpop.f32.mrb[0].mxu0
  %v347 = vadd.f32 0.0, %v346
  %v348 = vpop.f32.mrb[0].mxu0
  %349 = vmatprep.mubr.f32.mxu0 0.0
  %350 = vmatmul.mubr.f32.gmra.mrb[0].mxu0 %v229
  %v351 = vpop.f32.mrb[0].mxu0
  %v352 = vadd.f32 0.0, %v351
  %v353 = vpop.f32.mrb[0].mxu0
  %354 = vmatprep.mubr.f32.mxu0 0.0
  %355 = vmatmul.mubr.f32.gmra.mrb[0].mxu0 %v230
  %v356 = vpop.f32.mrb[0].mxu0
  %v357 = vadd.f32 0.0, %v356
  %v358 = vpop.f32.mrb[0].mxu0
  %359 = vmatprep.mubr.f32.mxu0 0.0
  %360 = vmatmul.mubr.f32.gmra.mrb[0].mxu0 %v231
  %v361 = vpop.f32.mrb[0].mxu0
  %v362 = vadd.f32 0.0, %v361
  %v363 = vpop.f32.mrb[0].mxu0
  %364 = vmatprep.mubr.f32.mxu0 0.0
  %365 = vmatmul.mubr.f32.gmra.mrb[0].mxu0 %v232
  %v366 = vpop.f32.mrb[0].mxu0
  %v367 = vadd.f32 0.0, %v366
  %v368 = vpop.f32.mrb[0].mxu0
  %369 = vmatprep.mubr.f32.mxu0 0.0
  %370 = vmatmul.mubr.f32.gmra.mrb[0].mxu0 %v233
  %v371 = vpop.f32.mrb[0].mxu0
  %v372 = vadd.f32 0.0, %v371
  %v373 = vpop.f32.mrb[0].mxu0
  %374 = vmatprep.mubr.f32.mxu0 0.0
  %375 = vmatmul.mubr.f32.gmra.mrb[0].mxu0 %v234
  %v376 = vpop.f32.mrb[0].mxu0
  %v377 = vadd.f32 0.0, %v376
  %v378 = vpop.f32.mrb[0].mxu0
  %379 = vmatprep.mubr.f32.mxu0 0.0
  %380 = vmatmul.mubr.f32.gmra.mrb[0].mxu0 %v235
  %v381 = vpop.f32.mrb[0].mxu0
  %v382 = vadd.f32 0.0, %v381
  %v383 = vpop.f32.mrb[0].mxu0
  %384 = vmatprep.mubr.f32.mxu0 0.0
  %385 = vmatmul.mubr.f32.gmra.mrb[0].mxu0 %v236
  %v386 = vpop.f32.mrb[0].mxu0
  %v387 = vadd.f32 0.0, %v386
  %v388 = vpop.f32.mrb[0].mxu0
  %389 = vmatprep.mubr.f32.mxu0 0.0
  %390 = vmatmul.mubr.f32.gmra.mrb[0].mxu0 %v237
  %v391 = vpop.f32.mrb[0].mxu0
  %v392 = vadd.f32 0.0, %v391
  %v393 = vpop.f32.mrb[0].mxu0
  %394 = vmatprep.mubr.f32.mxu0 0.0
  %395 = vmatmul.mubr.f32.gmra.mrb[0].mxu0 %v238
  %v396 = vpop.f32.mrb[0].mxu0
  %v397 = vadd.f32 0.0, %v396
  %v398 = vpop.f32.mrb[0].mxu0
  %399 = vmatprep.mubr.f32.mxu0 0.0
  %400 = vmatmul.mubr.f32.gmra.mrb[0].mxu0 %v239
  %v401 = vpop.f32.mrb[0].mxu0
  %v402 = vadd.f32 0.0, %v401
  %v403 = vpop.f32.mrb[0].mxu0
  %404 = vmatprep.mubr.f32.mxu0 0.0
  %405 = vmatmul.mubr.f32.gmra.mrb[0].mxu0 %v240
  %v406 = vpop.f32.mrb[0].mxu0
  %v407 = vadd.f32 0.0, %v406
  %v408 = vpop.f32.mrb[0].mxu0
  %409 = vmatprep.mubr.f32.mxu0 0.0
  %410 = vmatmul.mubr.f32.gmra.mrb[0].mxu0 %v241
  %v411 = vpop.f32.mrb[0].mxu0
  %v412 = vadd.f32 0.0, %v411
  %v413 = vpop.f32.mrb[0].mxu0
  %414 = vmatprep.mubr.f32.mxu0 0.0
  %415 = vmatmul.mubr.f32.gmra.mrb[0].mxu0 %v242
  %v416 = vpop.f32.mrb[0].mxu0
  %v417 = vadd.f32 0.0, %v416
  %v418 = vpop.f32.mrb[0].mxu0
  %419 = vdwg.mxu0
  %v420 = vadd.f32 %v243, %v342
  %v421 = vadd.f32 %v244, %v347
  %v422 = vadd.f32 %v245, %v352
  %v423 = vadd.f32 %v246, %v357
  %v424 = vadd.f32 %v247, %v362
  %v425 = vadd.f32 %v248, %v367
  %v426 = vadd.f32 %v249, %v372
  %v427 = vadd.f32 %v250, %v377
  %v428 = vadd.f32 %v251, %v382
  %v429 = vadd.f32 %v252, %v387
  %v430 = vadd.f32 %v253, %v392
  %v431 = vadd.f32 %v254, %v397
  %v432 = vadd.f32 %v255, %v402
  %v433 = vadd.f32 %v256, %v407
  %v434 = vadd.f32 %v257, %v412
  %v435 = vadd.f32 %v258, %v417
  %436 = vst [vmem:[#allocation2] sm:$0xff] %v420
  %437 = vst [vmem:[#allocation2 + $0x8] sm:$0xff] %v421
  %438 = vst [vmem:[#allocation2 + $0x10] sm:$0xff] %v422
  %439 = vst [vmem:[#allocation2 + $0x18] sm:$0xff] %v423
  %440 = vst [vmem:[#allocation2 + $0x20] sm:$0xff] %v424
  %441 = vst [vmem:[#allocation2 + $0x28] sm:$0xff] %v425
  %442 = vst [vmem:[#allocation2 + $0x30] sm:$0xff] %v426
  %443 = vst [vmem:[#allocation2 + $0x38] sm:$0xff] %v427
  %444 = vst [vmem:[#allocation2 + $0x40] sm:$0xff] %v428
  %445 = vst [vmem:[#allocation2 + $0x48] sm:$0xff] %v429
  %446 = vst [vmem:[#allocation2 + $0x50] sm:$0xff] %v430
  %447 = vst [vmem:[#allocation2 + $0x58] sm:$0xff] %v431
  %448 = vst [vmem:[#allocation2 + $0x60] sm:$0xff] %v432
  %449 = vst [vmem:[#allocation2 + $0x68] sm:$0xff] %v433
  %450 = vst [vmem:[#allocation2 + $0x70] sm:$0xff] %v434
  %451 = vst [vmem:[#allocation2 + $0x78] sm:$0xff] %v435
  %v452 = vld [vmem:[#allocation2] sm:$0xff]
  %v453 = vld [vmem:[#allocation2 + $0x8] sm:$0xff]
  %v454 = vld [vmem:[#allocation2 + $0x10] sm:$0xff]
  %v455 = vld [vmem:[#allocation2 + $0x18] sm:$0xff]
  %v456 = vld [vmem:[#allocation2 + $0x20] sm:$0xff]
  %v457 = vld [vmem:[#allocation2 + $0x28] sm:$0xff]
  %v458 = vld [vmem:[#allocation2 + $0x30] sm:$0xff]
  %v459 = vld [vmem:[#allocation2 + $0x38] sm:$0xff]
  %v460 = vld [vmem:[#allocation2 + $0x40] sm:$0xff]
  %v461 = vld [vmem:[#allocation2 + $0x48] sm:$0xff]
  %v462 = vld [vmem:[#allocation2 + $0x50] sm:$0xff]
  %v463 = vld [vmem:[#allocation2 + $0x58] sm:$0xff]
  %v464 = vld [vmem:[#allocation2 + $0x60] sm:$0xff]
  %v465 = vld [vmem:[#allocation2 + $0x68] sm:$0xff]
  %v466 = vld [vmem:[#allocation2 + $0x70] sm:$0xff]
  %v467 = vld [vmem:[#allocation2 + $0x78] sm:$0xff]
  %468 = vst [vmem:[%s5] sm:$0xff] %v452
  %469 = vst [vmem:[%s5 + $0x8] sm:$0xff] %v453
  %470 = vst [vmem:[%s5 + $0x10] sm:$0xff] %v454
  %471 = vst [vmem:[%s5 + $0x18] sm:$0xff] %v455
  %472 = vst [vmem:[%s5 + $0x20] sm:$0xff] %v456
  %473 = vst [vmem:[%s5 + $0x28] sm:$0xff] %v457
  %474 = vst [vmem:[%s5 + $0x30] sm:$0xff] %v458
  %475 = vst [vmem:[%s5 + $0x38] sm:$0xff] %v459
  %476 = vst [vmem:[%s5 + $0x40] sm:$0xff] %v460
  %477 = vst [vmem:[%s5 + $0x48] sm:$0xff] %v461
  %478 = vst [vmem:[%s5 + $0x50] sm:$0xff] %v462
  %479 = vst [vmem:[%s5 + $0x58] sm:$0xff] %v463
  %480 = vst [vmem:[%s5 + $0x60] sm:$0xff] %v464
  %481 = vst [vmem:[%s5 + $0x68] sm:$0xff] %v465
  %482 = vst [vmem:[%s5 + $0x70] sm:$0xff] %v466
  %483 = vst [vmem:[%s5 + $0x78] sm:$0xff] %v467
  // Predicated region
  $region22: #{positionwise_ffn.1} parent=0 // pred_check
    _
  $region23: #{positionwise_ffn.1} parent=0 // pred_check_branch
    %485 = sbr.rel (0) target = $region25
  $region24: #{positionwise_ffn.1} parent=0 // pred_region
    _
  $region25: #{positionwise_ffn.1} parent=0 // pred_fallthru
    _
  // Predicated region
  $region26: #{positionwise_ffn.1} parent=0 // pred_check
    _
  $region27: #{positionwise_ffn.1} parent=0 // pred_check_branch
    %487 = sbr.rel (0) target = $region29
  $region28: #{positionwise_ffn.1} parent=0 // pred_region
    _
  $region29: #{positionwise_ffn.1} parent=0 // pred_fallthru
    _

</llo_original>
